<compile_context>
chip_gen: v7x
topology: tpu7x:2x2x1
jax: 0.10.0
libtpu: 0.0.40
codegen_flags: <defaults>
</compile_context>

<pallas_src>
import functools

import jax
import jax.numpy as jnp
from jax import lax
from jax.experimental import pallas as pl
from jax.experimental.pallas import tpu as pltpu

LANES = 128
SUBLANES = 8
CHUNK_ROWS = 512                       # inner-loop chunk: (512,128) f32 = 256 KiB
BLOCK_BYTES = 4 * 1024 * 1024          # per-input per-step streaming block (4 MiB)
VMEM_LIMIT_BYTES = 32 * 1024 * 1024    # 2 inputs x 2 pipeline bufs x 4 MiB + headroom
_MIN_PALLAS_ELEMENTS = SUBLANES * LANES  # below one vreg tile, plain jnp is cheaper


def _num_tensorcores():
    """2-way core split only on v7x (2 TCs/chip); v4/v5e/v6e present one TC."""
    try:
        kind = jax.devices()[0].device_kind.lower()
    except Exception:
        return 1
    return 2 if "v7" in kind else 1


def _round_up(x, m):
    return ((x + m - 1) // m) * m


def _sqdiff_partial_kernel(pred_ref, gold_ref, partial_ref, *,
                           rows, bm, chunk, steps):
    """Accumulate per-core partial sums of (pred - gold)^2.

    partial_ref is a (1, 8, 128) f32 output block that stays resident across
    the reduction ("arbitrary") grid axis; keeping the accumulator vreg-shaped
    means the steady-state loop is pure VPU work (sub/mul/vreg-adds, no XLU).
    The final cross-lane reduce happens once in the wrapper.  The row mask is
    only evaluated for blocks that hang past `rows` (partial last block, or a
    2nd core's clamped phantom blocks on v7x).
    """
    c = pl.program_id(0)   # core-split axis (size 1 on v5e/v6e)
    j = pl.program_id(1)   # reduction axis

    @pl.when(j == 0)
    def _():
        partial_ref[...] = jnp.zeros_like(partial_ref)

    block_row0 = (c * steps + j) * bm
    n_chunks = bm // chunk

    def accumulate(masked):
        def body(i, acc):
            off = pl.multiple_of(i * chunk, chunk)
            p = pred_ref[pl.ds(off, chunk), :].astype(jnp.float32)
            g = gold_ref[pl.ds(off, chunk), :].astype(jnp.float32)
            d = p - g
            d2 = d * d
            if masked:
                local = lax.broadcasted_iota(jnp.int32, (chunk, 1), 0)
                d2 = jnp.where(block_row0 + off + local < rows, d2, 0.0)
            # (chunk,128) -> (chunk//8, 8, 128); summing the leading axis is
            # just chunk//8 elementwise vreg adds on the VPU.
            return acc + jnp.sum(
                d2.reshape(chunk // SUBLANES, SUBLANES, LANES), axis=0)
        return lax.fori_loop(0, n_chunks, body,
                             jnp.zeros((SUBLANES, LANES), jnp.float32))

    @pl.when(block_row0 + bm <= rows)
    def _():   # fully in-range block: no per-element iota/compare/select
        partial_ref[...] += accumulate(False)[None]

    @pl.when(block_row0 + bm > rows)
    def _():   # partial last block or phantom block on a 2nd core
        partial_ref[...] += accumulate(True)[None]


def distortion_vq_loss(pred, gold, vq_loss, alpha=10.0):
    """JAX/Pallas equivalent of DistortionVQLoss.forward."""
    assert pred.shape == gold.shape
    n = pred.size
    vq = jnp.asarray(vq_loss, dtype=jnp.float32)

    p = pred.reshape(-1)
    g = gold.reshape(-1)

    if n < _MIN_PALLAS_ELEMENTS:
        # Tiny input: kernel launch/pipeline fixed cost dominates; let XLA fuse.
        total = jnp.sum((p.astype(jnp.float32) - g.astype(jnp.float32)) ** 2)
    else:
        # Lane-align the main slab; the (<128 element) tail is summed in jnp.
        # No full-array pad / upcast: for n % 128 == 0 (common) the reshape
        # below is a free view of the original buffers.
        n_main = (n // LANES) * LANES
        tail = 0.0
        if n_main != n:
            tail = jnp.sum((p[n_main:].astype(jnp.float32)
                            - g[n_main:].astype(jnp.float32)) ** 2)
            p = p[:n_main]
            g = g[:n_main]

        rows = n_main // LANES
        itemsize = max(jnp.dtype(pred.dtype).itemsize,
                       jnp.dtype(gold.dtype).itemsize)
        # Rows per block sized by bytes so bf16 streams 2x the rows per step.
        bm_cap = max(CHUNK_ROWS,
                     (BLOCK_BYTES // (LANES * itemsize))
                     // CHUNK_ROWS * CHUNK_ROWS)
        rows8 = _round_up(rows, SUBLANES)
        if rows8 <= CHUNK_ROWS:
            bm = chunk = rows8
        else:
            chunk = CHUNK_ROWS
            bm = min(bm_cap, _round_up(rows8, CHUNK_ROWS))

        nblocks = pl.cdiv(rows, bm)
        ncores = min(_num_tensorcores(), nblocks)
        steps = pl.cdiv(nblocks, ncores)

        p2 = p.reshape(rows, LANES)
        g2 = g.reshape(rows, LANES)

        def block_map(c, j):
            # Clamp so a 2nd core's out-of-range steps re-read a valid block;
            # the in-kernel row mask zeroes their contribution.
            return (jnp.minimum(c * steps + j, nblocks - 1), 0)

        kernel = functools.partial(_sqdiff_partial_kernel,
                                   rows=rows, bm=bm, chunk=chunk, steps=steps)

        core_sem = pltpu.CORE_PARALLEL if ncores > 1 else pltpu.ARBITRARY

        partials = pl.pallas_call(
            kernel,
            out_shape=jax.ShapeDtypeStruct((ncores, SUBLANES, LANES),
                                           jnp.float32),
            grid_spec=pltpu.PrefetchScalarGridSpec(
                num_scalar_prefetch=0,
                grid=(ncores, steps),
                in_specs=[
                    pl.BlockSpec((bm, LANES), block_map),   # pred tile
                    pl.BlockSpec((bm, LANES), block_map),   # gold tile
                ],
                out_specs=pl.BlockSpec((1, SUBLANES, LANES),
                                       lambda c, j: (c, 0, 0)),
            ),
            compiler_params=pltpu.CompilerParams(
                dimension_semantics=(core_sem, pltpu.ARBITRARY),
                vmem_limit_bytes=VMEM_LIMIT_BYTES),
        )(p2, g2)

        total = jnp.sum(partials) + tail

    mse = total / jnp.float32(n)
    loss = mse + jnp.float32(alpha) * vq
    return {"vq_loss": vq, "mse_loss": mse, "loss": loss}


if __name__ == "__main__":
    key = jax.random.PRNGKey(0)
    k1, k2, k3 = jax.random.split(key, 3)

    # Small shapes consistent with an NCHW prediction/target pair.
    pred = jax.random.normal(k1, (2, 4, 16, 16), dtype=jnp.float32)
    gold = jax.random.normal(k2, (2, 4, 16, 16), dtype=jnp.float32)
    vq_loss = jax.random.uniform(k3, (), dtype=jnp.float32)

    out = distortion_vq_loss(pred, gold, vq_loss, alpha=10.0)
    jax.block_until_ready(out)

    # Reference check in plain JAX.
    mse_ref = jnp.mean((pred - gold) ** 2)
    loss_ref = mse_ref + 10.0 * vq_loss
    assert jnp.allclose(out["mse_loss"], mse_ref, rtol=1e-5, atol=1e-6)
    assert jnp.allclose(out["loss"], loss_ref, rtol=1e-5, atol=1e-6)
    assert jnp.allclose(out["vq_loss"], vq_loss)

    # Extra check: lane-misaligned element count (exercises the masked partial
    # block in the kernel and the jnp tail path; no full-array pad copies).
    k4, k5 = jax.random.split(k3)
    pred2 = jax.random.normal(k4, (3, 5, 17, 13), dtype=jnp.float32)
    gold2 = jax.random.normal(k5, (3, 5, 17, 13), dtype=jnp.float32)
    out2 = distortion_vq_loss(pred2, gold2, vq_loss, alpha=10.0)
    jax.block_until_ready(out2)
    mse_ref2 = jnp.mean((pred2 - gold2) ** 2)
    assert jnp.allclose(out2["mse_loss"], mse_ref2, rtol=1e-5, atol=1e-6)

    print("KERNEL_OK")
</pallas_src>

<mosaic_0001>
module attributes {stable_mosaic.version = 11 : i64} {
  func.func @_sqdiff_partial_kernel(%arg0: i32, %arg1: i32, %arg2: memref<16x128xf32, #tpu.memory_space<vmem>>, %arg3: memref<16x128xf32, #tpu.memory_space<vmem>>, %arg4: memref<1x8x128xf32, #tpu.memory_space<vmem>>) attributes {dimension_semantics = [#tpu.dimension_semantics<arbitrary>, #tpu.dimension_semantics<arbitrary>], iteration_bounds = array<i64: 1, 1>, scalar_prefetch = 0 : i64, scratch_operands = 0 : i64, tpu.core_type = #tpu.core_type<tc>, window_params = [{transform_indices = @transform_0, window_bounds = array<i64: 16, 128>}, {transform_indices = @transform_1, window_bounds = array<i64: 16, 128>}, {transform_indices = @transform_2, window_bounds = array<i64: 1, 8, 128>}]} {
    %c0_i32 = arith.constant 0 : i32
    %0 = arith.cmpi eq, %arg1, %c0_i32 : i32
    %1 = arith.extui %0 : i1 to i32
    %c0_i32_0 = arith.constant 0 : i32
    %2 = arith.cmpi ne, %1, %c0_i32_0 : i32
    scf.if %2 {
      %cst = arith.constant 0.000000e+00 : f32
      %14 = vector.broadcast %cst : f32 to vector<1x8x128xf32>
      %c0 = arith.constant 0 : index
      %c0_7 = arith.constant 0 : index
      %c0_8 = arith.constant 0 : index
      %15 = vector.load %arg4[%c0, %c0_7, %c0_8] : memref<1x8x128xf32, #tpu.memory_space<vmem>>, vector<1x8x128xf32>
      tpu.vector_store %arg4[%c0, %c0_7, %c0_8], %14 {strides = array<i32>} : memref<1x8x128xf32, #tpu.memory_space<vmem>>, vector<1x8x128xf32>,
    } else {
    }
    %c1_i32 = arith.constant 1 : i32
    %3 = arith.muli %arg0, %c1_i32 : i32
    %4 = arith.addi %3, %arg1 : i32
    %c16_i32 = arith.constant 16 : i32
    %5 = arith.muli %4, %c16_i32 : i32
    %c16_i32_1 = arith.constant 16 : i32
    %6 = arith.addi %5, %c16_i32_1 : i32
    %c16_i32_2 = arith.constant 16 : i32
    %7 = arith.cmpi sle, %6, %c16_i32_2 : i32
    %8 = arith.extui %7 : i1 to i32
    %c0_i32_3 = arith.constant 0 : i32
    %9 = arith.cmpi ne, %8, %c0_i32_3 : i32
    scf.if %9 {
      %c0 = arith.constant 0 : index
      %c0_7 = arith.constant 0 : index
      %c0_8 = arith.constant 0 : index
      %14 = vector.load %arg4[%c0, %c0_7, %c0_8] : memref<1x8x128xf32, #tpu.memory_space<vmem>>, vector<1x8x128xf32>
      %cst = arith.constant 0.000000e+00 : f32
      %15 = vector.broadcast %cst : f32 to vector<8x128xf32>
      %c0_i32_9 = arith.constant 0 : i32
      %c16_i32_10 = arith.constant 16 : i32
      %16 = arith.muli %c0_i32_9, %c16_i32_10 : i32
      %17 = tpu.assume_multiple %16, 16 : i32
      %18 = arith.index_cast %17 : i32 to index
      %c0_11 = arith.constant 0 : index
      %19 = vector.load %arg2[%18, %c0_11] : memref<16x128xf32, #tpu.memory_space<vmem>>, vector<16x128xf32>
      %20 = arith.index_cast %17 : i32 to index
      %c0_12 = arith.constant 0 : index
      %21 = vector.load %arg3[%20, %c0_12] : memref<16x128xf32, #tpu.memory_space<vmem>>, vector<16x128xf32>
      %22 = arith.subf %19, %21 : vector<16x128xf32>
      %23 = arith.mulf %22, %22 : vector<16x128xf32>
      %24 = vector.shape_cast %23 : vector<16x128xf32> to vector<2x8x128xf32>
      %cst_13 = arith.constant dense<0.000000e+00> : vector<8x128xf32>
      %25 = vector.multi_reduction <add>, %24, %cst_13 [0] : vector<2x8x128xf32> to vector<8x128xf32>
      %26 = arith.addf %15, %25 : vector<8x128xf32>
      %c1_i32_14 = arith.constant 1 : i32
      %27 = vector.shape_cast %26 : vector<8x128xf32> to vector<1x8x128xf32>
      %28 = arith.addf %14, %27 : vector<1x8x128xf32>
      %c0_15 = arith.constant 0 : index
      %c0_16 = arith.constant 0 : index
      %c0_17 = arith.constant 0 : index
      %29 = vector.load %arg4[%c0_15, %c0_16, %c0_17] : memref<1x8x128xf32, #tpu.memory_space<vmem>>, vector<1x8x128xf32>
      tpu.vector_store %arg4[%c0_15, %c0_16, %c0_17], %28 {strides = array<i32>} : memref<1x8x128xf32, #tpu.memory_space<vmem>>, vector<1x8x128xf32>,
    } else {
    }
    %c16_i32_4 = arith.constant 16 : i32
    %10 = arith.addi %5, %c16_i32_4 : i32
    %c16_i32_5 = arith.constant 16 : i32
    %11 = arith.cmpi sgt, %10, %c16_i32_5 : i32
    %12 = arith.extui %11 : i1 to i32
    %c0_i32_6 = arith.constant 0 : i32
    %13 = arith.cmpi ne, %12, %c0_i32_6 : i32
    scf.if %13 {
      %c0 = arith.constant 0 : index
      %c0_7 = arith.constant 0 : index
      %c0_8 = arith.constant 0 : index
      %14 = vector.load %arg4[%c0, %c0_7, %c0_8] : memref<1x8x128xf32, #tpu.memory_space<vmem>>, vector<1x8x128xf32>
      %cst = arith.constant 0.000000e+00 : f32
      %15 = vector.broadcast %cst : f32 to vector<8x128xf32>
      %c0_i32_9 = arith.constant 0 : i32
      %c16_i32_10 = arith.constant 16 : i32
      %16 = arith.muli %c0_i32_9, %c16_i32_10 : i32
      %17 = tpu.assume_multiple %16, 16 : i32
      %18 = arith.index_cast %17 : i32 to index
      %c0_11 = arith.constant 0 : index
      %19 = vector.load %arg2[%18, %c0_11] : memref<16x128xf32, #tpu.memory_space<vmem>>, vector<16x128xf32>
      %20 = arith.index_cast %17 : i32 to index
      %c0_12 = arith.constant 0 : index
      %21 = vector.load %arg3[%20, %c0_12] : memref<16x128xf32, #tpu.memory_space<vmem>>, vector<16x128xf32>
      %22 = arith.subf %19, %21 : vector<16x128xf32>
      %23 = arith.mulf %22, %22 : vector<16x128xf32>
      %24 = tpu.iota {dimensions = array<i32: 0>} : vector<16x1xi32>
      %25 = arith.addi %5, %17 : i32
      %26 = vector.broadcast %25 : i32 to vector<16x1xi32>
      %27 = arith.addi %26, %24 : vector<16x1xi32>
      %c16_i32_13 = arith.constant 16 : i32
      %28 = vector.broadcast %c16_i32_13 : i32 to vector<16x1xi32>
      %29 = arith.cmpi slt, %27, %28 : vector<16x1xi32>
      %cst_14 = arith.constant 0.000000e+00 : f32
      %30 = vector.shape_cast %29 : vector<16x1xi1> to vector<16x1xi1>
      %31 = vector.broadcast %30 : vector<16x1xi1> to vector<16x128xi1>
      %32 = vector.broadcast %cst_14 : f32 to vector<16x128xf32>
      %33 = arith.select %31, %23, %32 : vector<16x128xi1>, vector<16x128xf32>
      %34 = vector.shape_cast %33 : vector<16x128xf32> to vector<2x8x128xf32>
      %cst_15 = arith.constant dense<0.000000e+00> : vector<8x128xf32>
      %35 = vector.multi_reduction <add>, %34, %cst_15 [0] : vector<2x8x128xf32> to vector<8x128xf32>
      %36 = arith.addf %15, %35 : vector<8x128xf32>
      %c1_i32_16 = arith.constant 1 : i32
      %37 = vector.shape_cast %36 : vector<8x128xf32> to vector<1x8x128xf32>
      %38 = arith.addf %14, %37 : vector<1x8x128xf32>
      %c0_17 = arith.constant 0 : index
      %c0_18 = arith.constant 0 : index
      %c0_19 = arith.constant 0 : index
      %39 = vector.load %arg4[%c0_17, %c0_18, %c0_19] : memref<1x8x128xf32, #tpu.memory_space<vmem>>, vector<1x8x128xf32>
      tpu.vector_store %arg4[%c0_17, %c0_18, %c0_19], %38 {strides = array<i32>} : memref<1x8x128xf32, #tpu.memory_space<vmem>>, vector<1x8x128xf32>,
    } else {
    }
    return
  }
  func.func @transform_0(%arg0: i32, %arg1: i32) -> (i32, i32) {
    %c1_i32 = arith.constant 1 : i32
    %0 = arith.muli %arg0, %c1_i32 : i32
    %1 = arith.addi %0, %arg1 : i32
    %c0_i32 = arith.constant 0 : i32
    %2 = arith.minsi %1, %c0_i32 : i32
    %c0_i32_0 = arith.constant 0 : i32
    %c0_i32_1 = arith.constant 0 : i32
    return %2, %c0_i32_0 : i32, i32
  }
  func.func @transform_1(%arg0: i32, %arg1: i32) -> (i32, i32) {
    %c1_i32 = arith.constant 1 : i32
    %0 = arith.muli %arg0, %c1_i32 : i32
    %1 = arith.addi %0, %arg1 : i32
    %c0_i32 = arith.constant 0 : i32
    %2 = arith.minsi %1, %c0_i32 : i32
    %c0_i32_0 = arith.constant 0 : i32
    %c0_i32_1 = arith.constant 0 : i32
    return %2, %c0_i32_0 : i32, i32
  }
  func.func @transform_2(%arg0: i32, %arg1: i32) -> (i32, i32, i32) {
    %c0_i32 = arith.constant 0 : i32
    %c0_i32_0 = arith.constant 0 : i32
    %c0_i32_1 = arith.constant 0 : i32
    return %arg0, %c0_i32, %c0_i32_0 : i32, i32, i32
  }
}

</mosaic_0001>

<llo_original>
// kernel: tpu_custom_call.1
$region0: #{tpu_custom_call.1}
  #allocation0 [shape = 'u32[]', space=smem, size = 0x4, offset = 0x4, fixed_abs, tag = 'smem constant byte address 0x4 - core index']
  #allocation1 [shape = 'u32[144,128]{1,0:T(1,128)}', space=vmem, size = 0x12000, scoped, tag = 'internal scratch']
  %s0 = inlined_call_operand.hbm [shape: f32[16,128], index: 0, kind: input, shape index: {}]
  %s1 = inlined_call_operand.hbm [shape: f32[16,128], index: 1, kind: input, shape index: {}]
  %s2 = inlined_call_operand.hbm [shape: f32[1,8,128], index: 2, kind: output, shape index: {}]
  %s3 = sld [smem:[#allocation0]]
  $region38: #{tpu_custom_call.1} parent=0
    _
  %s5 = ssub.s32 1, %s3
  %s6 = scalar_select 0, %s5, %s3
  $region1: #{tpu_custom_call.1} parent=0
    #allocation2 [shape = 'u8[8192]{0}', space=vmem, size = 0x2000, scoped, tag = 'input window, operand 0, single buffered']
    #allocation3 [shape = 's32[1]{0}', space=sflag, size = 0x4, scoped, tag = 'scoped memory for tpu_custom_call.1']
    #allocation4 [shape = 's32[1]{0}', space=sflag, size = 0x4, scoped, tag = 'scoped memory for tpu_custom_call.1']
    #allocation5 [shape = 'u8[8192]{0}', space=vmem, size = 0x2000, scoped, tag = 'input window, operand 1, single buffered']
    #allocation6 [shape = 's32[1]{0}', space=sflag, size = 0x4, scoped, tag = 'scoped memory for tpu_custom_call.1']
    #allocation7 [shape = 'u8[4096]{0}', space=vmem, size = 0x1000, scoped, tag = 'output window, operand 0, single buffered']
    %7 = vsyncpa [#allocation3], 0
    %8 = vsyncpa [#allocation6], 0
    %9 = vsyncpa [#allocation4], 0
    // Predicated region
    $region2: #{tpu_custom_call.1} parent=1 // pred_check
      _
    $region3: #{tpu_custom_call.1} parent=1 // pred_check_branch
      %11 = sbr.rel (0) target = $region5
    $region4: #{tpu_custom_call.1} parent=1 // pred_region
      %s12 = sadd.s32 0, 0
      %p13 = scmp.lt.s32.totalorder %s12, 0
      %s14 = scalar_select %p13, %s12, 0
      %s15 = smul.u32 2, %s14
      %s17 = ssub.s32 256, 256
      %18 = vsyncadd [#allocation3], %s17
      %s19 = smul.addr %s15, 128
      %s20 = scalar_lea.hbm %s0, %s19
      %s21 = sshll.u32 [#allocation2], 4
      %s22 = int_to_ptr.vmem [resolvable:$true] %s21
      %27 = dma.hbm_to_vmem [thread:$0]  %s20, 256, %s22, [#allocation3], 128, 128, 8
    $region5: #{tpu_custom_call.1} parent=1 // pred_fallthru
      _
    // Predicated region
    $region6: #{tpu_custom_call.1} parent=1 // pred_check
      _
    $region7: #{tpu_custom_call.1} parent=1 // pred_check_branch
      %29 = sbr.rel (0) target = $region9
    $region8: #{tpu_custom_call.1} parent=1 // pred_region
      %s30 = sadd.s32 0, 0
      %p31 = scmp.lt.s32.totalorder %s30, 0
      %s32 = scalar_select %p31, %s30, 0
      %s33 = smul.u32 2, %s32
      %s35 = ssub.s32 256, 256
      %36 = vsyncadd [#allocation6], %s35
      %s37 = smul.addr %s33, 128
      %s38 = scalar_lea.hbm %s1, %s37
      %s39 = sshll.u32 [#allocation5], 4
      %s40 = int_to_ptr.vmem [resolvable:$true] %s39
      %45 = dma.hbm_to_vmem [thread:$0]  %s38, 256, %s40, [#allocation6], 128, 128, 8
    $region9: #{tpu_custom_call.1} parent=1 // pred_fallthru
      _
    // Predicated region
    $region10: #{tpu_custom_call.1} parent=1 // pred_check
      _
    $region11: #{tpu_custom_call.1} parent=1 // pred_check_branch
      %47 = sbr.rel (0) target = $region13
    $region12: #{tpu_custom_call.1} parent=1 // pred_region
      %48 = dma.done [#allocation3], 256
    $region13: #{tpu_custom_call.1} parent=1 // pred_fallthru
      _
    // Predicated region
    $region14: #{tpu_custom_call.1} parent=1 // pred_check
      _
    $region15: #{tpu_custom_call.1} parent=1 // pred_check_branch
      %50 = sbr.rel (0) target = $region17
    $region16: #{tpu_custom_call.1} parent=1 // pred_region
      %51 = dma.done [#allocation6], 256
    $region17: #{tpu_custom_call.1} parent=1 // pred_fallthru
      _
    %s52 = sadd.s32 0, 0
    %p53 = scmp.lt.s32.totalorder %s52, 0
    %s54 = scalar_select %p53, %s52, 0
    %s55 = smul.u32 2, %s54
    %s56 = sadd.s32 0, 0
    %p57 = scmp.lt.s32.totalorder %s56, 0
    %s58 = scalar_select %p57, %s56, 0
    %s59 = smul.u32 2, %s58
    %p60 = scmp.eq.s32.totalorder 0, 0
    // Predicated region
    $region18: #{tpu_custom_call.1} parent=1 // pred_check
      %p61 = pneg %p60
    $region19: #{tpu_custom_call.1} parent=1 // pred_check_branch
      %63 = sbr.rel (%p61) target = $region21
    $region20: #{tpu_custom_call.1} parent=1 // pred_region
      %64 = vst [vmem:[#allocation7] sm:$0xff] 0.0
    $region21: #{tpu_custom_call.1} parent=1 // pred_fallthru
      _
    %s65 = sadd.s32 0, 0
    %s66 = smul.u32 %s65, 16
    %s67 = sadd.s32 %s66, 16
    %p68 = scmp.le.s32.totalorder %s67, 16
    // Predicated region
    $region22: #{tpu_custom_call.1} parent=1 // pred_check
      %p69 = pneg %p68
    $region23: #{tpu_custom_call.1} parent=1 // pred_check_branch
      %71 = sbr.rel (%p69) target = $region25
    $region24: #{tpu_custom_call.1} parent=1 // pred_region
      %v72 = vld [vmem:[#allocation7] sm:$0xff]
      %v73 = vld [vmem:[#allocation2] sm:$0xff]
      %v74 = vld [vmem:[#allocation2 + $0x8] sm:$0xff]
      %v75 = vld [vmem:[#allocation5] sm:$0xff]
      %v76 = vld [vmem:[#allocation5 + $0x8] sm:$0xff]
      %v77 = vsub.f32 %v73, %v75
      %v78 = vsub.f32 %v74, %v76
      %v79 = vmul.f32 %v77, %v77
      %v80 = vmul.f32 %v78, %v78
      %v81 = vadd.f32 %v79, %v80
      %v82 = vadd.f32 %v81, 0.0
      %v83 = vadd.f32 %v72, %v82
      %84 = vst [vmem:[#allocation7] sm:$0xff] %v83
    $region25: #{tpu_custom_call.1} parent=1 // pred_fallthru
      _
    %p85 = scmp.gt.s32.totalorder %s67, 16
    // Predicated region
    $region26: #{tpu_custom_call.1} parent=1 // pred_check
      %p86 = pneg %p85
    $region27: #{tpu_custom_call.1} parent=1 // pred_check_branch
      %88 = sbr.rel (%p86) target = $region29
    $region28: #{tpu_custom_call.1} parent=1 // pred_region
      %v89 = vld [vmem:[#allocation7] sm:$0xff]
      %v90 = vld [vmem:[#allocation2] sm:$0xff]
      %v91 = vld [vmem:[#allocation2 + $0x8] sm:$0xff]
      %v92 = vld [vmem:[#allocation5] sm:$0xff]
      %v93 = vld [vmem:[#allocation5 + $0x8] sm:$0xff]
      %v94 = vsub.f32 %v90, %v92
      %v95 = vsub.f32 %v91, %v93
      %v96 = vmul.f32 %v94, %v94
      %v97 = vmul.f32 %v95, %v95
      %v98 = vlaneseq
      %v99 = vshrl.u32 %v98, 7
      %v100 = vadd.s32 %v99, 8
      %s101 = sadd.s32 %s66, 0
      %v102 = vstv %s101
      %v103 = vadd.s32 %v102, %v99
      %v104 = vadd.s32 %v102, %v100
      %vm105 = vcmp.lt.s32.totalorder %v103, 16
      %vm106 = vcmp.lt.s32.totalorder %v104, 16
      %v107 = vsel %vm105, 1, 0
      %v108 = vsel %vm106, 1, 0
      %vm109 = vcmp.eq.s32.totalorder %v107, 1
      %vm110 = vcmp.eq.s32.totalorder %v108, 1
      %v111 = vsel %vm109, %v96, 0.0
      %v112 = vsel %vm110, %v97, 0.0
      %v113 = vadd.f32 %v111, %v112
      %v114 = vadd.f32 %v113, 0.0
      %v115 = vadd.f32 %v89, %v114
      %116 = vst [vmem:[#allocation7] sm:$0xff] %v115
    $region29: #{tpu_custom_call.1} parent=1 // pred_fallthru
      _
    // Predicated region
    $region30: #{tpu_custom_call.1} parent=1 // pred_check
      _
    $region31: #{tpu_custom_call.1} parent=1 // pred_check_branch
      %118 = sbr.rel (0) target = $region33
    $region32: #{tpu_custom_call.1} parent=1 // pred_region
      %s120 = ssub.s32 128, 128
      %121 = vsyncadd [#allocation4], %s120
      %s123 = sshll.u32 [#allocation7], 4
      %s124 = int_to_ptr.vmem [resolvable:$true] %s123
      %126 = dma.vmem_to_hbm [thread:$0]  %s124, 128, %s2, [#allocation4]
    $region33: #{tpu_custom_call.1} parent=1 // pred_fallthru
      _
    // Predicated region
    $region34: #{tpu_custom_call.1} parent=1 // pred_check
      _
    $region35: #{tpu_custom_call.1} parent=1 // pred_check_branch
      %128 = sbr.rel (0) target = $region37
    $region36: #{tpu_custom_call.1} parent=1 // pred_region
      %129 = dma.done [#allocation4], 128
    $region37: #{tpu_custom_call.1} parent=1 // pred_fallthru
      _
    %130 = vsyncpa [#allocation3], 1
    %131 = vsyncpa [#allocation6], 1
    %132 = vsyncpa [#allocation4], 1

</llo_original>
